<compile_context>
chip_gen: v7x
topology: tpu7x:2x2x1
jax: 0.10.0
libtpu: 0.0.40
codegen_flags: <defaults>
</compile_context>

<pallas_src>
import functools

import jax
import jax.numpy as jnp
from jax.experimental import pallas as pl
from jax.experimental.pallas import tpu as pltpu

BN_EPS = 1e-5
LANE = 128
TB_MAX = 65536  # lane tile (multiple of 128); ~8 MiB of double-buffered blocks


def _round_up(x, m):
    return ((x + m - 1) // m) * m


def _fused_kernel(w12c_ref, b12_ref, w34t_ref, b34_ref, gamma_ref, beta_ref,
                  x_ref, o_ref, sum_ref, sumsq_ref, a_ref, c_ref,
                  *, n_valid, tb, n_tiles):
    """grid = (phase, tile).

    phase 0: accumulate BN batch statistics of h = W12^T x + b12, then fold
             them into per-feature (a, c) at the last tile.
    phase 1: out = W34^T (a * h + c) + b34, lane-dense (5, TB) store.
    """
    phase = pl.program_id(0)
    i = pl.program_id(1)

    # h (8, tb): 8-padded feature rows, batch on lanes.  The 3-wide contraction
    # is done as sublane-dense VPU broadcast-FMAs (K=3 is too small for the MXU
    # to matter); every op runs on full (8, tb) slabs.
    x0 = x_ref[0:1, :]
    x1 = x_ref[1:2, :]
    x2 = x_ref[2:3, :]
    h = (b12_ref[...]
         + x0 * w12c_ref[:, 0:1]
         + x1 * w12c_ref[:, 1:2]
         + x2 * w12c_ref[:, 2:3])                                      # (8, tb)

    @pl.when(jnp.logical_and(phase == 0, i == 0))
    def _init():
        sum_ref[...] = jnp.zeros_like(sum_ref)
        sumsq_ref[...] = jnp.zeros_like(sumsq_ref)

    @pl.when(phase == 0)
    def _stats():
        def accum(hv):
            sum_ref[...] += jnp.sum(hv, axis=1, keepdims=True)         # (8, 1)
            sumsq_ref[...] += jnp.sum(hv * hv, axis=1, keepdims=True)  # (8, 1)

        if n_valid % tb == 0:
            accum(h)                               # all tiles full: no masking at all
        else:
            @pl.when(i < n_tiles - 1)
            def _full():
                accum(h)

            @pl.when(i == n_tiles - 1)             # mask pad lanes on tail tile only
            def _tail():
                tail = n_valid - (n_tiles - 1) * tb
                col = jax.lax.broadcasted_iota(jnp.int32, (1, tb), 1)
                accum(jnp.where(col < tail, h, 0.0))

        @pl.when(i == n_tiles - 1)                 # fold BatchNorm in-kernel
        def _fold():
            # TODO(synk): single-pass E[h^2]-mean^2 can lose precision when
            # |mean| >> std at very large batch; fine at test tolerances.
            inv_n = 1.0 / float(max(n_valid, 1))
            mean = sum_ref[...] * inv_n
            var = sumsq_ref[...] * inv_n - mean * mean                 # biased var
            inv_std = jax.lax.rsqrt(var + BN_EPS)
            a = gamma_ref[...] * inv_std
            a_ref[...] = a
            c_ref[...] = beta_ref[...] - mean * a

    @pl.when(phase == 1)
    def _apply():
        z = a_ref[...] * h + c_ref[...]                                # (8, tb)
        y = jnp.dot(w34t_ref[...], z,
                    preferred_element_type=jnp.float32) + b34_ref[...]  # MXU
        o_ref[...] = y[0:5, :]                                         # lane-dense


@jax.jit
def bigger_model_forward(x, params):
    """x: (B, 3) float32 -> (B, 5) float32 (training-mode BatchNorm semantics)."""
    n = x.shape[0]
    f32 = jnp.float32

    # ---- host-side linear folding (no nonlinearity inside each pair) ----
    w12 = params["w1"] @ params["w2"]                     # (3, 5)
    b12 = params["b1"] @ params["w2"] + params["b2"]      # (5,)
    w34 = params["w3"] @ params["w4"]                     # (5, 5)
    b34 = params["b3"] @ params["w4"] + params["b4"]      # (5,)

    # ---- 8-padded, transposed weight operands (features on sublanes) ----
    w12c = jnp.pad(w12.T.astype(f32), ((0, 3), (0, 0)))   # (8, 3): col k = w12[k, :]
    w34t = jnp.pad(w34.T.astype(f32), ((0, 3), (0, 3)))   # (8, 8): [m, j] = w34[j, m]
    b12p = jnp.pad(b12.astype(f32), (0, 3))[:, None]      # (8, 1)
    b34p = jnp.pad(b34.astype(f32), (0, 3))[:, None]      # (8, 1)
    gamma_p = jnp.pad(params["gamma"].astype(f32), (0, 3))[:, None]
    beta_p = jnp.pad(params["beta"].astype(f32), (0, 3))[:, None]

    # ---- batch-on-lanes layout, padded to a 128-multiple lane tile ----
    b_pad = _round_up(max(n, 1), LANE)
    tb = min(TB_MAX, b_pad)
    b_pad = _round_up(b_pad, tb)
    n_tiles = b_pad // tb
    # TODO(synk): x.T/pad and the final .T materialize as XLA copies; avoidable
    # only by keeping the (3,B)/(5,B) layout in the surrounding graph.
    xT = jnp.pad(x.T.astype(f32), ((0, 0), (0, b_pad - n)))            # (3, B_pad)

    const_map = lambda p, i: (0, 0)
    oT = pl.pallas_call(
        functools.partial(_fused_kernel, n_valid=n, tb=tb, n_tiles=n_tiles),
        grid=(2, n_tiles),
        in_specs=[
            pl.BlockSpec((8, 3), const_map),       # w12c  (resident)
            pl.BlockSpec((8, 1), const_map),       # b12
            pl.BlockSpec((8, 8), const_map),       # w34t
            pl.BlockSpec((8, 1), const_map),       # b34
            pl.BlockSpec((8, 1), const_map),       # gamma
            pl.BlockSpec((8, 1), const_map),       # beta
            pl.BlockSpec((3, tb), lambda p, i: (0, i)),                # x tile
        ],
        # Phase 0 pins the output to block 0 (stays resident, never written
        # back); phase 1 walks the tiles with real data -> no wasted HBM writes.
        out_specs=pl.BlockSpec((5, tb), lambda p, i: (0, i * p)),
        out_shape=jax.ShapeDtypeStruct((5, b_pad), f32),
        scratch_shapes=[pltpu.VMEM((8, 1), f32)] * 4,   # sum, sumsq, a, c
        compiler_params=pltpu.CompilerParams(
            dimension_semantics=("arbitrary", "arbitrary"),
            vmem_limit_bytes=32 * 1024 * 1024,
        ),
    )(w12c, b12p, w34t, b34p, gamma_p, beta_p, xT)

    return oT[:, :n].T                                                  # (B, 5)


def init_params(key):
    """PyTorch-default-like init. Linear weights stored (in, out); biases 1-D."""
    def linear(k, fan_in, fan_out):
        kw, kb = jax.random.split(k)
        bound = 1.0 / jnp.sqrt(float(fan_in))
        w = jax.random.uniform(kw, (fan_in, fan_out), jnp.float32, -bound, bound)
        b = jax.random.uniform(kb, (fan_out,), jnp.float32, -bound, bound)
        return w, b

    k1, k2, k3, k4 = jax.random.split(key, 4)
    w1, b1 = linear(k1, 3, 4)
    w2, b2 = linear(k2, 4, 5)
    w3, b3 = linear(k3, 5, 6)
    w4, b4 = linear(k4, 6, 5)
    return {
        "w1": w1, "b1": b1,
        "w2": w2, "b2": b2,
        "gamma": jnp.ones((5,), jnp.float32),
        "beta": jnp.zeros((5,), jnp.float32),
        "w3": w3, "b3": b3,
        "w4": w4, "b4": b4,
    }


def reference_forward(x, p):
    """Pure-JAX reference (unfused chain, training-mode BatchNorm1d)."""
    h = x @ p["w1"] + p["b1"]
    h = h @ p["w2"] + p["b2"]
    mean = jnp.mean(h, axis=0, keepdims=True)
    var = jnp.mean((h - mean) ** 2, axis=0, keepdims=True)
    h = (h - mean) * jax.lax.rsqrt(var + BN_EPS) * p["gamma"] + p["beta"]
    h = h @ p["w3"] + p["b3"]
    return h @ p["w4"] + p["b4"]


if __name__ == "__main__":
    key = jax.random.PRNGKey(0)
    kx, kp = jax.random.split(key)

    batch = 8
    x = jax.random.normal(kx, (batch, 3), dtype=jnp.float32)
    params = init_params(kp)

    out = jax.block_until_ready(bigger_model_forward(x, params))
    ref = reference_forward(x, params)

    assert out.shape == (batch, 5), out.shape
    assert jnp.allclose(out, ref, atol=1e-4, rtol=1e-4), (out, ref)

    print("KERNEL_OK")
</pallas_src>

<mosaic_0001>
module attributes {stable_mosaic.version = 11 : i64} {
  func.func @_fused_kernel(%arg0: i32, %arg1: i32, %arg2: memref<8x3xf32, #tpu.memory_space<vmem>>, %arg3: memref<8x1xf32, #tpu.memory_space<vmem>>, %arg4: memref<8x8xf32, #tpu.memory_space<vmem>>, %arg5: memref<8x1xf32, #tpu.memory_space<vmem>>, %arg6: memref<8x1xf32, #tpu.memory_space<vmem>>, %arg7: memref<8x1xf32, #tpu.memory_space<vmem>>, %arg8: memref<3x128xf32, #tpu.memory_space<vmem>>, %arg9: memref<5x128xf32, #tpu.memory_space<vmem>>, %arg10: memref<8x1xf32, #tpu.memory_space<vmem>>, %arg11: memref<8x1xf32, #tpu.memory_space<vmem>>, %arg12: memref<8x1xf32, #tpu.memory_space<vmem>>, %arg13: memref<8x1xf32, #tpu.memory_space<vmem>>) attributes {dimension_semantics = [#tpu.dimension_semantics<arbitrary>, #tpu.dimension_semantics<arbitrary>], iteration_bounds = array<i64: 2, 1>, scalar_prefetch = 0 : i64, scratch_operands = 4 : i64, tpu.core_type = #tpu.core_type<tc>, window_params = [{pipeline_mode = #tpu.pipeline_mode<synchronous>, transform_indices = @transform_0, window_bounds = array<i64: 8, 3>}, {pipeline_mode = #tpu.pipeline_mode<synchronous>, transform_indices = @transform_1, window_bounds = array<i64: 8, 1>}, {pipeline_mode = #tpu.pipeline_mode<synchronous>, transform_indices = @transform_2, window_bounds = array<i64: 8, 8>}, {pipeline_mode = #tpu.pipeline_mode<synchronous>, transform_indices = @transform_3, window_bounds = array<i64: 8, 1>}, {pipeline_mode = #tpu.pipeline_mode<synchronous>, transform_indices = @transform_4, window_bounds = array<i64: 8, 1>}, {pipeline_mode = #tpu.pipeline_mode<synchronous>, transform_indices = @transform_5, window_bounds = array<i64: 8, 1>}, {transform_indices = @transform_6, window_bounds = array<i64: 3, 128>}, {transform_indices = @transform_7, window_bounds = array<i64: 5, 128>}]} {
    %c0 = arith.constant 0 : index
    %c0_0 = arith.constant 0 : index
    %0 = vector.load %arg8[%c0, %c0_0] : memref<3x128xf32, #tpu.memory_space<vmem>>, vector<1x128xf32>
    %c1 = arith.constant 1 : index
    %c0_1 = arith.constant 0 : index
    %1 = vector.load %arg8[%c1, %c0_1] : memref<3x128xf32, #tpu.memory_space<vmem>>, vector<1x128xf32>
    %c2 = arith.constant 2 : index
    %c0_2 = arith.constant 0 : index
    %2 = vector.load %arg8[%c2, %c0_2] : memref<3x128xf32, #tpu.memory_space<vmem>>, vector<1x128xf32>
    %c0_3 = arith.constant 0 : index
    %c0_4 = arith.constant 0 : index
    %3 = vector.load %arg3[%c0_3, %c0_4] : memref<8x1xf32, #tpu.memory_space<vmem>>, vector<8x1xf32>
    %c0_5 = arith.constant 0 : index
    %c0_6 = arith.constant 0 : index
    %4 = vector.load %arg2[%c0_5, %c0_6] : memref<8x3xf32, #tpu.memory_space<vmem>>, vector<8x1xf32>
    %5 = vector.broadcast %0 : vector<1x128xf32> to vector<8x128xf32>
    %6 = vector.broadcast %4 : vector<8x1xf32> to vector<8x128xf32>
    %7 = arith.mulf %5, %6 : vector<8x128xf32>
    %8 = vector.broadcast %3 : vector<8x1xf32> to vector<8x128xf32>
    %9 = arith.addf %8, %7 : vector<8x128xf32>
    %c0_7 = arith.constant 0 : index
    %c1_8 = arith.constant 1 : index
    %10 = vector.load %arg2[%c0_7, %c1_8] : memref<8x3xf32, #tpu.memory_space<vmem>>, vector<8x1xf32>
    %11 = vector.broadcast %1 : vector<1x128xf32> to vector<8x128xf32>
    %12 = vector.broadcast %10 : vector<8x1xf32> to vector<8x128xf32>
    %13 = arith.mulf %11, %12 : vector<8x128xf32>
    %14 = arith.addf %9, %13 : vector<8x128xf32>
    %c0_9 = arith.constant 0 : index
    %c2_10 = arith.constant 2 : index
    %15 = vector.load %arg2[%c0_9, %c2_10] : memref<8x3xf32, #tpu.memory_space<vmem>>, vector<8x1xf32>
    %16 = vector.broadcast %2 : vector<1x128xf32> to vector<8x128xf32>
    %17 = vector.broadcast %15 : vector<8x1xf32> to vector<8x128xf32>
    %18 = arith.mulf %16, %17 : vector<8x128xf32>
    %19 = arith.addf %14, %18 : vector<8x128xf32>
    %c0_i32 = arith.constant 0 : i32
    %20 = arith.cmpi eq, %arg0, %c0_i32 : i32
    %c0_i32_11 = arith.constant 0 : i32
    %21 = arith.cmpi eq, %arg1, %c0_i32_11 : i32
    %22 = arith.andi %20, %21 : i1
    %23 = arith.extui %22 : i1 to i32
    %c0_i32_12 = arith.constant 0 : i32
    %24 = arith.cmpi ne, %23, %c0_i32_12 : i32
    scf.if %24 {
      %cst = arith.constant 0.000000e+00 : f32
      %31 = vector.broadcast %cst : f32 to vector<8x1xf32>
      %c0_16 = arith.constant 0 : index
      %c0_17 = arith.constant 0 : index
      %32 = vector.load %arg10[%c0_16, %c0_17] : memref<8x1xf32, #tpu.memory_space<vmem>>, vector<8x1xf32>
      tpu.vector_store %arg10[%c0_16, %c0_17], %31 {strides = array<i32>} : memref<8x1xf32, #tpu.memory_space<vmem>>, vector<8x1xf32>,
      %cst_18 = arith.constant 0.000000e+00 : f32
      %33 = vector.broadcast %cst_18 : f32 to vector<8x1xf32>
      %c0_19 = arith.constant 0 : index
      %c0_20 = arith.constant 0 : index
      %34 = vector.load %arg11[%c0_19, %c0_20] : memref<8x1xf32, #tpu.memory_space<vmem>>, vector<8x1xf32>
      tpu.vector_store %arg11[%c0_19, %c0_20], %33 {strides = array<i32>} : memref<8x1xf32, #tpu.memory_space<vmem>>, vector<8x1xf32>,
    } else {
    }
    %c0_i32_13 = arith.constant 0 : i32
    %25 = arith.cmpi eq, %arg0, %c0_i32_13 : i32
    %26 = arith.extui %25 : i1 to i32
    %c0_i32_14 = arith.constant 0 : i32
    %27 = arith.cmpi ne, %26, %c0_i32_14 : i32
    scf.if %27 {
      %c0_i32_16 = arith.constant 0 : i32
      %31 = arith.cmpi slt, %arg1, %c0_i32_16 : i32
      %32 = arith.extui %31 : i1 to i32
      %c0_i32_17 = arith.constant 0 : i32
      %33 = arith.cmpi ne, %32, %c0_i32_17 : i32
      scf.if %33 {
        %c0_22 = arith.constant 0 : index
        %c0_23 = arith.constant 0 : index
        %40 = vector.load %arg10[%c0_22, %c0_23] : memref<8x1xf32, #tpu.memory_space<vmem>>, vector<8x1xf32>
        %cst = arith.constant dense<0.000000e+00> : vector<8xf32>
        %41 = vector.multi_reduction <add>, %19, %cst [1] : vector<8x128xf32> to vector<8xf32>
        %42 = vector.shape_cast %41 : vector<8xf32> to vector<8x1xf32>
        %43 = arith.addf %40, %42 : vector<8x1xf32>
        %c0_24 = arith.constant 0 : index
        %c0_25 = arith.constant 0 : index
        %44 = vector.load %arg10[%c0_24, %c0_25] : memref<8x1xf32, #tpu.memory_space<vmem>>, vector<8x1xf32>
        tpu.vector_store %arg10[%c0_24, %c0_25], %43 {strides = array<i32>} : memref<8x1xf32, #tpu.memory_space<vmem>>, vector<8x1xf32>,
        %c0_26 = arith.constant 0 : index
        %c0_27 = arith.constant 0 : index
        %45 = vector.load %arg11[%c0_26, %c0_27] : memref<8x1xf32, #tpu.memory_space<vmem>>, vector<8x1xf32>
        %46 = arith.mulf %19, %19 : vector<8x128xf32>
        %cst_28 = arith.constant dense<0.000000e+00> : vector<8xf32>
        %47 = vector.multi_reduction <add>, %46, %cst_28 [1] : vector<8x128xf32> to vector<8xf32>
        %48 = vector.shape_cast %47 : vector<8xf32> to vector<8x1xf32>
        %49 = arith.addf %45, %48 : vector<8x1xf32>
        %c0_29 = arith.constant 0 : index
        %c0_30 = arith.constant 0 : index
        %50 = vector.load %arg11[%c0_29, %c0_30] : memref<8x1xf32, #tpu.memory_space<vmem>>, vector<8x1xf32>
        tpu.vector_store %arg11[%c0_29, %c0_30], %49 {strides = array<i32>} : memref<8x1xf32, #tpu.memory_space<vmem>>, vector<8x1xf32>,
      } else {
      }
      %c0_i32_18 = arith.constant 0 : i32
      %34 = arith.cmpi eq, %arg1, %c0_i32_18 : i32
      %35 = arith.extui %34 : i1 to i32
      %c0_i32_19 = arith.constant 0 : i32
      %36 = arith.cmpi ne, %35, %c0_i32_19 : i32
      scf.if %36 {
        %40 = tpu.iota {dimensions = array<i32: 1>} : vector<1x128xi32>
        %c8_i32 = arith.constant 8 : i32
        %41 = vector.broadcast %c8_i32 : i32 to vector<1x128xi32>
        %42 = arith.cmpi slt, %40, %41 : vector<1x128xi32>
        %cst = arith.constant 0.000000e+00 : f32
        %43 = vector.shape_cast %42 : vector<1x128xi1> to vector<1x128xi1>
        %44 = vector.broadcast %43 : vector<1x128xi1> to vector<8x128xi1>
        %45 = vector.broadcast %cst : f32 to vector<8x128xf32>
        %46 = arith.select %44, %19, %45 : vector<8x128xi1>, vector<8x128xf32>
        %c0_22 = arith.constant 0 : index
        %c0_23 = arith.constant 0 : index
        %47 = vector.load %arg10[%c0_22, %c0_23] : memref<8x1xf32, #tpu.memory_space<vmem>>, vector<8x1xf32>
        %cst_24 = arith.constant dense<0.000000e+00> : vector<8xf32>
        %48 = vector.multi_reduction <add>, %46, %cst_24 [1] : vector<8x128xf32> to vector<8xf32>
        %49 = vector.shape_cast %48 : vector<8xf32> to vector<8x1xf32>
        %50 = arith.addf %47, %49 : vector<8x1xf32>
        %c0_25 = arith.constant 0 : index
        %c0_26 = arith.constant 0 : index
        %51 = vector.load %arg10[%c0_25, %c0_26] : memref<8x1xf32, #tpu.memory_space<vmem>>, vector<8x1xf32>
        tpu.vector_store %arg10[%c0_25, %c0_26], %50 {strides = array<i32>} : memref<8x1xf32, #tpu.memory_space<vmem>>, vector<8x1xf32>,
        %c0_27 = arith.constant 0 : index
        %c0_28 = arith.constant 0 : index
        %52 = vector.load %arg11[%c0_27, %c0_28] : memref<8x1xf32, #tpu.memory_space<vmem>>, vector<8x1xf32>
        %53 = arith.mulf %46, %46 : vector<8x128xf32>
        %cst_29 = arith.constant dense<0.000000e+00> : vector<8xf32>
        %54 = vector.multi_reduction <add>, %53, %cst_29 [1] : vector<8x128xf32> to vector<8xf32>
        %55 = vector.shape_cast %54 : vector<8xf32> to vector<8x1xf32>
        %56 = arith.addf %52, %55 : vector<8x1xf32>
        %c0_30 = arith.constant 0 : index
        %c0_31 = arith.constant 0 : index
        %57 = vector.load %arg11[%c0_30, %c0_31] : memref<8x1xf32, #tpu.memory_space<vmem>>, vector<8x1xf32>
        tpu.vector_store %arg11[%c0_30, %c0_31], %56 {strides = array<i32>} : memref<8x1xf32, #tpu.memory_space<vmem>>, vector<8x1xf32>,
      } else {
      }
      %c0_i32_20 = arith.constant 0 : i32
      %37 = arith.cmpi eq, %arg1, %c0_i32_20 : i32
      %38 = arith.extui %37 : i1 to i32
      %c0_i32_21 = arith.constant 0 : i32
      %39 = arith.cmpi ne, %38, %c0_i32_21 : i32
      scf.if %39 {
        %c0_22 = arith.constant 0 : index
        %c0_23 = arith.constant 0 : index
        %40 = vector.load %arg10[%c0_22, %c0_23] : memref<8x1xf32, #tpu.memory_space<vmem>>, vector<8x1xf32>
        %cst = arith.constant 1.250000e-01 : f32
        %41 = vector.broadcast %cst : f32 to vector<8x1xf32>
        %42 = arith.mulf %40, %41 : vector<8x1xf32>
        %c0_24 = arith.constant 0 : index
        %c0_25 = arith.constant 0 : index
        %43 = vector.load %arg11[%c0_24, %c0_25] : memref<8x1xf32, #tpu.memory_space<vmem>>, vector<8x1xf32>
        %cst_26 = arith.constant 1.250000e-01 : f32
        %44 = vector.broadcast %cst_26 : f32 to vector<8x1xf32>
        %45 = arith.mulf %43, %44 : vector<8x1xf32>
        %46 = arith.mulf %42, %42 : vector<8x1xf32>
        %47 = arith.subf %45, %46 : vector<8x1xf32>
        %cst_27 = arith.constant 9.99999974E-6 : f32
        %48 = vector.broadcast %cst_27 : f32 to vector<8x1xf32>
        %49 = arith.addf %47, %48 : vector<8x1xf32>
        %50 = math.rsqrt %49 : vector<8x1xf32>
        %c0_28 = arith.constant 0 : index
        %c0_29 = arith.constant 0 : index
        %51 = vector.load %arg6[%c0_28, %c0_29] : memref<8x1xf32, #tpu.memory_space<vmem>>, vector<8x1xf32>
        %52 = arith.mulf %51, %50 : vector<8x1xf32>
        %c0_30 = arith.constant 0 : index
        %c0_31 = arith.constant 0 : index
        %53 = vector.load %arg12[%c0_30, %c0_31] : memref<8x1xf32, #tpu.memory_space<vmem>>, vector<8x1xf32>
        tpu.vector_store %arg12[%c0_30, %c0_31], %52 {strides = array<i32>} : memref<8x1xf32, #tpu.memory_space<vmem>>, vector<8x1xf32>,
        %c0_32 = arith.constant 0 : index
        %c0_33 = arith.constant 0 : index
        %54 = vector.load %arg7[%c0_32, %c0_33] : memref<8x1xf32, #tpu.memory_space<vmem>>, vector<8x1xf32>
        %55 = arith.mulf %42, %52 : vector<8x1xf32>
        %56 = arith.subf %54, %55 : vector<8x1xf32>
        %c0_34 = arith.constant 0 : index
        %c0_35 = arith.constant 0 : index
        %57 = vector.load %arg13[%c0_34, %c0_35] : memref<8x1xf32, #tpu.memory_space<vmem>>, vector<8x1xf32>
        tpu.vector_store %arg13[%c0_34, %c0_35], %56 {strides = array<i32>} : memref<8x1xf32, #tpu.memory_space<vmem>>, vector<8x1xf32>,
      } else {
      }
    } else {
    }
    %c1_i32 = arith.constant 1 : i32
    %28 = arith.cmpi eq, %arg0, %c1_i32 : i32
    %29 = arith.extui %28 : i1 to i32
    %c0_i32_15 = arith.constant 0 : i32
    %30 = arith.cmpi ne, %29, %c0_i32_15 : i32
    scf.if %30 {
      %c0_16 = arith.constant 0 : index
      %c0_17 = arith.constant 0 : index
      %31 = vector.load %arg12[%c0_16, %c0_17] : memref<8x1xf32, #tpu.memory_space<vmem>>, vector<8x1xf32>
      %32 = vector.broadcast %31 : vector<8x1xf32> to vector<8x128xf32>
      %33 = arith.mulf %32, %19 : vector<8x128xf32>
      %c0_18 = arith.constant 0 : index
      %c0_19 = arith.constant 0 : index
      %34 = vector.load %arg13[%c0_18, %c0_19] : memref<8x1xf32, #tpu.memory_space<vmem>>, vector<8x1xf32>
      %35 = vector.broadcast %34 : vector<8x1xf32> to vector<8x128xf32>
      %36 = arith.addf %33, %35 : vector<8x128xf32>
      %c0_20 = arith.constant 0 : index
      %c0_21 = arith.constant 0 : index
      %37 = vector.load %arg4[%c0_20, %c0_21] : memref<8x8xf32, #tpu.memory_space<vmem>>, vector<8x8xf32>
      %cst = arith.constant dense<0.000000e+00> : vector<8x128xf32>
      %38 = tpu.matmul %37, %36, %cst {dimension_numbers = #tpu.dot_dimension_numbers<[1], [0], [0], [1], [0, 0, 1, 1], [], []>} : vector<8x8xf32>, vector<8x128xf32>, vector<8x128xf32> -> vector<8x128xf32>
      %c0_22 = arith.constant 0 : index
      %c0_23 = arith.constant 0 : index
      %39 = vector.load %arg5[%c0_22, %c0_23] : memref<8x1xf32, #tpu.memory_space<vmem>>, vector<8x1xf32>
      %40 = vector.broadcast %39 : vector<8x1xf32> to vector<8x128xf32>
      %41 = arith.addf %38, %40 : vector<8x128xf32>
      %42 = vector.extract_strided_slice %41 {offsets = [0, 0], sizes = [5, 128], strides = [1, 1]} : vector<8x128xf32> to vector<5x128xf32>
      %c0_24 = arith.constant 0 : index
      %c0_25 = arith.constant 0 : index
      %43 = vector.load %arg9[%c0_24, %c0_25] : memref<5x128xf32, #tpu.memory_space<vmem>>, vector<5x128xf32>
      tpu.vector_store %arg9[%c0_24, %c0_25], %42 {strides = array<i32>} : memref<5x128xf32, #tpu.memory_space<vmem>>, vector<5x128xf32>,
    } else {
    }
    return
  }
  func.func @transform_0(%arg0: i32, %arg1: i32) -> (i32, i32) {
    %c0_i32 = arith.constant 0 : i32
    %c0_i32_0 = arith.constant 0 : i32
    %c0_i32_1 = arith.constant 0 : i32
    return %c0_i32, %c0_i32_0 : i32, i32
  }
  func.func @transform_1(%arg0: i32, %arg1: i32) -> (i32, i32) {
    %c0_i32 = arith.constant 0 : i32
    %c0_i32_0 = arith.constant 0 : i32
    %c0_i32_1 = arith.constant 0 : i32
    return %c0_i32, %c0_i32_0 : i32, i32
  }
  func.func @transform_2(%arg0: i32, %arg1: i32) -> (i32, i32) {
    %c0_i32 = arith.constant 0 : i32
    %c0_i32_0 = arith.constant 0 : i32
    %c0_i32_1 = arith.constant 0 : i32
    return %c0_i32, %c0_i32_0 : i32, i32
  }
  func.func @transform_3(%arg0: i32, %arg1: i32) -> (i32, i32) {
    %c0_i32 = arith.constant 0 : i32
    %c0_i32_0 = arith.constant 0 : i32
    %c0_i32_1 = arith.constant 0 : i32
    return %c0_i32, %c0_i32_0 : i32, i32
  }
  func.func @transform_4(%arg0: i32, %arg1: i32) -> (i32, i32) {
    %c0_i32 = arith.constant 0 : i32
    %c0_i32_0 = arith.constant 0 : i32
    %c0_i32_1 = arith.constant 0 : i32
    return %c0_i32, %c0_i32_0 : i32, i32
  }
  func.func @transform_5(%arg0: i32, %arg1: i32) -> (i32, i32) {
    %c0_i32 = arith.constant 0 : i32
    %c0_i32_0 = arith.constant 0 : i32
    %c0_i32_1 = arith.constant 0 : i32
    return %c0_i32, %c0_i32_0 : i32, i32
  }
  func.func @transform_6(%arg0: i32, %arg1: i32) -> (i32, i32) {
    %c0_i32 = arith.constant 0 : i32
    %c0_i32_0 = arith.constant 0 : i32
    return %c0_i32, %arg1 : i32, i32
  }
  func.func @transform_7(%arg0: i32, %arg1: i32) -> (i32, i32) {
    %0 = arith.muli %arg1, %arg0 : i32
    %c0_i32 = arith.constant 0 : i32
    %c0_i32_0 = arith.constant 0 : i32
    return %c0_i32, %0 : i32, i32
  }
}

</mosaic_0001>

<llo_original>
// kernel: bigger_model_forward.1
$region0: #{bigger_model_forward.1}
  #allocation0 [shape = 'u32[]', space=smem, size = 0x4, offset = 0x4, fixed_abs, tag = 'smem constant byte address 0x4 - core index']
  #allocation1 [shape = 'u32[144,128]{1,0:T(1,128)}', space=vmem, size = 0x12000, scoped, tag = 'internal scratch']
  #allocation2 [shape = 'f32[8,1]{1,0:T(8,128)}', space=vmem, size = 0x1000, scoped, tag = 'scratch operand']
  #allocation3 [shape = 'f32[8,1]{1,0:T(8,128)}', space=vmem, size = 0x1000, scoped, tag = 'scratch operand']
  #allocation4 [shape = 'f32[8,1]{1,0:T(8,128)}', space=vmem, size = 0x1000, scoped, tag = 'scratch operand']
  #allocation5 [shape = 'f32[8,1]{1,0:T(8,128)}', space=vmem, size = 0x1000, scoped, tag = 'scratch operand']
  %s0 = inlined_call_operand.vmem [shape: f32[8,3], index: 0, kind: input, shape index: {}]
  %s1 = inlined_call_operand.vmem [shape: f32[8,1], index: 1, kind: input, shape index: {}]
  %s2 = inlined_call_operand.vmem [shape: f32[8,8], index: 2, kind: input, shape index: {}]
  %s3 = inlined_call_operand.vmem [shape: f32[8,1], index: 3, kind: input, shape index: {}]
  %s4 = inlined_call_operand.vmem [shape: f32[8,1], index: 4, kind: input, shape index: {}]
  %s5 = inlined_call_operand.vmem [shape: f32[8,1], index: 5, kind: input, shape index: {}]
  %s6 = inlined_call_operand.vmem [shape: f32[3,128], index: 6, kind: input, shape index: {}]
  %s7 = inlined_call_operand.vmem [shape: f32[5,128], index: 7, kind: output, shape index: {}]
  %s8 = sld [smem:[#allocation0]]
  $region81: #{bigger_model_forward.1} parent=0
    _
  %s10 = ssub.s32 1, %s8
  %s11 = scalar_select 0, %s10, %s8
  loop: start=0, step=1, limit=4
  $region2: #{bigger_model_forward.1} parent=0 // loop_pre_header
    _
  $region3: #{bigger_model_forward.1} parent=0 // loop_header
    %s13 = sphi 0, %s17
    %p14 = scmp.ge.s32.totalorder %s13, 4
    %s20 = sphi 0, %s32
    %s21 = sphi 0, %s28
    %s22 = sphi 0, %s20
    %s23 = sphi 0, %s21
    %s24 = sphi 0, %s22
    %s25 = sphi 0, %s23
    %s33 = sphi 0, %s33
    %s35 = sphi 0, %s33
    %s36 = sphi 0, %s35
    %s50 = sphi 0, %s36
    %s54 = sphi 0, %s54
    %s56 = sphi 0, %s54
    %s57 = sphi 0, %s56
    %s71 = sphi 0, %s57
    %s75 = sphi 0, %s75
    %s77 = sphi 0, %s75
    %s78 = sphi 0, %s77
    %s92 = sphi 0, %s78
    %s96 = sphi 0, %s96
    %s98 = sphi 0, %s96
    %s99 = sphi 0, %s98
    %s113 = sphi 0, %s99
    %s117 = sphi 0, %s117
    %s119 = sphi 0, %s117
    %s120 = sphi 0, %s119
    %s134 = sphi 0, %s120
    %s138 = sphi 0, %s138
    %s140 = sphi 0, %s138
    %s141 = sphi 0, %s140
    %s155 = sphi 0, %s141
    %s161 = sphi 0, %s163
    %s164 = sphi 0, %s161
    %s165 = sphi 0, %s164
    %s181 = sphi 0, %s165
    %s189 = sphi 0, %s191
    %s192 = sphi 0, %s189
    %s193 = sphi 0, %s192
    %s209 = sphi 0, %s193
  $region4: #{bigger_model_forward.1} parent=0 // loop_header_branch
    %16 = sbr.rel (%p14) target = $region8
  $region5: #{bigger_model_forward.1} parent=0 // loop_body
    %s18 = ssub.s32 %s13, 1
    %s19 = ssub.s32 %s13, 2
    %s26 = sadd.s32 1, %s21
    %p27 = scmp.ge.s32.totalorder %s26, 1
    %s28 = scalar_select %p27, 0, %s26
    %s29 = sadd.s32 1, %s20
    %s30 = scalar_select %p27, %s29, %s20
    %p31 = scmp.ge.s32.totalorder %s30, 2
    %s32 = scalar_select %p31, 0, %s30
    %s34 = sadd.s32 %s33, 1
    %p37 = scmp.eq.s32.totalorder %s13, 1
    %p38 = scmp.ne.s32.totalorder %s33, %s35
    %p39 = scmp.eq.s32.totalorder %s13, 0
    %p40 = por %p38, %p39
    %p41 = scmp.ne.s32.totalorder %s33, %s35
    %p42 = scmp.eq.s32.totalorder %s18, 1
    %p43 = por %p41, %p42
    %p44 = scmp.ne.s32.totalorder %s35, %s36
    %p45 = scmp.eq.s32.totalorder %s18, 0
    %p46 = por %p44, %p45
    %p47 = scmp.ne.s32.totalorder %s35, %s36
    %p48 = scmp.eq.s32.totalorder %s19, 1
    %p49 = por %p47, %p48
    %p51 = scmp.ne.s32.totalorder %s36, %s50
    %p52 = scmp.eq.s32.totalorder %s19, 0
    %p53 = por %p51, %p52
    %s55 = sadd.s32 %s54, 1
    %p58 = scmp.eq.s32.totalorder %s13, 1
    %p59 = scmp.ne.s32.totalorder %s54, %s56
    %p60 = scmp.eq.s32.totalorder %s13, 0
    %p61 = por %p59, %p60
    %p62 = scmp.ne.s32.totalorder %s54, %s56
    %p63 = scmp.eq.s32.totalorder %s18, 1
    %p64 = por %p62, %p63
    %p65 = scmp.ne.s32.totalorder %s56, %s57
    %p66 = scmp.eq.s32.totalorder %s18, 0
    %p67 = por %p65, %p66
    %p68 = scmp.ne.s32.totalorder %s56, %s57
    %p69 = scmp.eq.s32.totalorder %s19, 1
    %p70 = por %p68, %p69
    %p72 = scmp.ne.s32.totalorder %s57, %s71
    %p73 = scmp.eq.s32.totalorder %s19, 0
    %p74 = por %p72, %p73
    %s76 = sadd.s32 %s75, 1
    %p79 = scmp.eq.s32.totalorder %s13, 1
    %p80 = scmp.ne.s32.totalorder %s75, %s77
    %p81 = scmp.eq.s32.totalorder %s13, 0
    %p82 = por %p80, %p81
    %p83 = scmp.ne.s32.totalorder %s75, %s77
    %p84 = scmp.eq.s32.totalorder %s18, 1
    %p85 = por %p83, %p84
    %p86 = scmp.ne.s32.totalorder %s77, %s78
    %p87 = scmp.eq.s32.totalorder %s18, 0
    %p88 = por %p86, %p87
    %p89 = scmp.ne.s32.totalorder %s77, %s78
    %p90 = scmp.eq.s32.totalorder %s19, 1
    %p91 = por %p89, %p90
    %p93 = scmp.ne.s32.totalorder %s78, %s92
    %p94 = scmp.eq.s32.totalorder %s19, 0
    %p95 = por %p93, %p94
    %s97 = sadd.s32 %s96, 1
    %p100 = scmp.eq.s32.totalorder %s13, 1
    %p101 = scmp.ne.s32.totalorder %s96, %s98
    %p102 = scmp.eq.s32.totalorder %s13, 0
    %p103 = por %p101, %p102
    %p104 = scmp.ne.s32.totalorder %s96, %s98
    %p105 = scmp.eq.s32.totalorder %s18, 1
    %p106 = por %p104, %p105
    %p107 = scmp.ne.s32.totalorder %s98, %s99
    %p108 = scmp.eq.s32.totalorder %s18, 0
    %p109 = por %p107, %p108
    %p110 = scmp.ne.s32.totalorder %s98, %s99
    %p111 = scmp.eq.s32.totalorder %s19, 1
    %p112 = por %p110, %p111
    %p114 = scmp.ne.s32.totalorder %s99, %s113
    %p115 = scmp.eq.s32.totalorder %s19, 0
    %p116 = por %p114, %p115
    %s118 = sadd.s32 %s117, 1
    %p121 = scmp.eq.s32.totalorder %s13, 1
    %p122 = scmp.ne.s32.totalorder %s117, %s119
    %p123 = scmp.eq.s32.totalorder %s13, 0
    %p124 = por %p122, %p123
    %p125 = scmp.ne.s32.totalorder %s117, %s119
    %p126 = scmp.eq.s32.totalorder %s18, 1
    %p127 = por %p125, %p126
    %p128 = scmp.ne.s32.totalorder %s119, %s120
    %p129 = scmp.eq.s32.totalorder %s18, 0
    %p130 = por %p128, %p129
    %p131 = scmp.ne.s32.totalorder %s119, %s120
    %p132 = scmp.eq.s32.totalorder %s19, 1
    %p133 = por %p131, %p132
    %p135 = scmp.ne.s32.totalorder %s120, %s134
    %p136 = scmp.eq.s32.totalorder %s19, 0
    %p137 = por %p135, %p136
    %s139 = sadd.s32 %s138, 1
    %p142 = scmp.eq.s32.totalorder %s13, 1
    %p143 = scmp.ne.s32.totalorder %s138, %s140
    %p144 = scmp.eq.s32.totalorder %s13, 0
    %p145 = por %p143, %p144
    %p146 = scmp.ne.s32.totalorder %s138, %s140
    %p147 = scmp.eq.s32.totalorder %s18, 1
    %p148 = por %p146, %p147
    %p149 = scmp.ne.s32.totalorder %s140, %s141
    %p150 = scmp.eq.s32.totalorder %s18, 0
    %p151 = por %p149, %p150
    %p152 = scmp.ne.s32.totalorder %s140, %s141
    %p153 = scmp.eq.s32.totalorder %s19, 1
    %p154 = por %p152, %p153
    %p156 = scmp.ne.s32.totalorder %s141, %s155
    %p157 = scmp.eq.s32.totalorder %s19, 0
    %p158 = por %p156, %p157
    %s159 = ssub.s32 %s21, %s28
    %p160 = scmp.eq.s32.totalorder %s159, 0
    %s162 = sadd.s32 %s161, 1
    %s163 = scalar_select %p160, %s161, %s162
    %p166 = pneg %p160
    %p167 = scmp.eq.s32.totalorder %s13, 1
    %p168 = por %p166, %p167
    %p169 = scmp.ne.s32.totalorder %s161, %s164
    %p170 = scmp.eq.s32.totalorder %s13, 0
    %p171 = por %p169, %p170
    %p172 = scmp.ne.s32.totalorder %s161, %s164
    %p173 = scmp.eq.s32.totalorder %s18, 1
    %p174 = por %p172, %p173
    %p175 = scmp.ne.s32.totalorder %s164, %s165
    %p176 = scmp.eq.s32.totalorder %s18, 0
    %p177 = por %p175, %p176
    %p178 = scmp.ne.s32.totalorder %s164, %s165
    %p179 = scmp.eq.s32.totalorder %s19, 1
    %p180 = por %p178, %p179
    %p182 = scmp.ne.s32.totalorder %s165, %s181
    %p183 = scmp.eq.s32.totalorder %s19, 0
    %p184 = por %p182, %p183
    %s185 = smul.u32 %s21, %s20
    %s186 = smul.u32 %s28, %s32
    %s187 = ssub.s32 %s185, %s186
    %p188 = scmp.eq.s32.totalorder %s187, 0
    %s190 = sadd.s32 %s189, 1
    %s191 = scalar_select %p188, %s189, %s190
    %p194 = pneg %p188
    %p195 = scmp.eq.s32.totalorder %s13, 1
    %p196 = por %p194, %p195
    %p197 = scmp.ne.s32.totalorder %s189, %s192
    %p198 = scmp.eq.s32.totalorder %s13, 0
    %p199 = por %p197, %p198
    %p200 = scmp.ne.s32.totalorder %s189, %s192
    %p201 = scmp.eq.s32.totalorder %s18, 1
    %p202 = por %p200, %p201
    %p203 = scmp.ne.s32.totalorder %s192, %s193
    %p204 = scmp.eq.s32.totalorder %s18, 0
    %p205 = por %p203, %p204
    %p206 = scmp.ne.s32.totalorder %s192, %s193
    %p207 = scmp.eq.s32.totalorder %s19, 1
    %p208 = por %p206, %p207
    %p210 = scmp.ne.s32.totalorder %s193, %s209
    %p211 = scmp.eq.s32.totalorder %s19, 0
    %p212 = por %p210, %p211
    %p213 = scmp.le.s32.totalorder 1, %s13
    %p214 = scmp.lt.s32.totalorder %s13, 3
    %p215 = pnand %p213, %p214
    %p216 = pneg %p215
    // Predicated region
    $region9: #{bigger_model_forward.1} parent=5 // pred_check
      _
    $region10: #{bigger_model_forward.1} parent=5 // pred_check_branch
      %218 = sbr.rel (%p215) target = $region12
    $region11: #{bigger_model_forward.1} parent=5 // pred_region
      %s219 = ssub.s32 %s13, 1
      // Predicated region
      $region13: #{bigger_model_forward.1} parent=11 // pred_check
        %p220 = pneg %p46
      $region14: #{bigger_model_forward.1} parent=11 // pred_check_branch
        %222 = sbr.rel (%p220) target = $region16
      $region15: #{bigger_model_forward.1} parent=11 // pred_region
        _
      $region16: #{bigger_model_forward.1} parent=11 // pred_fallthru
        _
      // Predicated region
      $region17: #{bigger_model_forward.1} parent=11 // pred_check
        %p223 = pneg %p67
      $region18: #{bigger_model_forward.1} parent=11 // pred_check_branch
        %225 = sbr.rel (%p223) target = $region20
      $region19: #{bigger_model_forward.1} parent=11 // pred_region
        _
      $region20: #{bigger_model_forward.1} parent=11 // pred_fallthru
        _
      // Predicated region
      $region21: #{bigger_model_forward.1} parent=11 // pred_check
        %p226 = pneg %p88
      $region22: #{bigger_model_forward.1} parent=11 // pred_check_branch
        %228 = sbr.rel (%p226) target = $region24
      $region23: #{bigger_model_forward.1} parent=11 // pred_region
        _
      $region24: #{bigger_model_forward.1} parent=11 // pred_fallthru
        _
      // Predicated region
      $region25: #{bigger_model_forward.1} parent=11 // pred_check
        %p229 = pneg %p109
      $region26: #{bigger_model_forward.1} parent=11 // pred_check_branch
        %231 = sbr.rel (%p229) target = $region28
      $region27: #{bigger_model_forward.1} parent=11 // pred_region
        _
      $region28: #{bigger_model_forward.1} parent=11 // pred_fallthru
        _
      // Predicated region
      $region29: #{bigger_model_forward.1} parent=11 // pred_check
        %p232 = pneg %p130
      $region30: #{bigger_model_forward.1} parent=11 // pred_check_branch
        %234 = sbr.rel (%p232) target = $region32
      $region31: #{bigger_model_forward.1} parent=11 // pred_region
        _
      $region32: #{bigger_model_forward.1} parent=11 // pred_fallthru
        _
      // Predicated region
      $region33: #{bigger_model_forward.1} parent=11 // pred_check
        %p235 = pneg %p151
      $region34: #{bigger_model_forward.1} parent=11 // pred_check_branch
        %237 = sbr.rel (%p235) target = $region36
      $region35: #{bigger_model_forward.1} parent=11 // pred_region
        _
      $region36: #{bigger_model_forward.1} parent=11 // pred_fallthru
        _
      // Predicated region
      $region37: #{bigger_model_forward.1} parent=11 // pred_check
        %p238 = pneg %p177
      $region38: #{bigger_model_forward.1} parent=11 // pred_check_branch
        %240 = sbr.rel (%p238) target = $region40
      $region39: #{bigger_model_forward.1} parent=11 // pred_region
        %p241 = scmp.lt.s32.totalorder %s23, 0
        %s242 = scalar_select %p241, %s23, 0
        %s243 = smul.addr %s242, 4
        %s244 = scalar_lea.vmem %s6, %s243
      $region40: #{bigger_model_forward.1} parent=11 // pred_fallthru
        _
    $region12: #{bigger_model_forward.1} parent=5 // pred_fallthru
      _
    %p245 = scmp.lt.s32.totalorder %s13, 2
    // Predicated region
    $region41: #{bigger_model_forward.1} parent=5 // pred_check
      %p246 = pneg %p245
    $region42: #{bigger_model_forward.1} parent=5 // pred_check_branch
      %248 = sbr.rel (%p246) target = $region44
    $region43: #{bigger_model_forward.1} parent=5 // pred_region
      _
    $region44: #{bigger_model_forward.1} parent=5 // pred_fallthru
      _
    %p249 = scmp.le.s32.totalorder 1, %s13
    %p250 = scmp.lt.s32.totalorder %s13, 3
    %p251 = pnand %p249, %p250
    %p252 = pneg %p251
    // Predicated region
    $region45: #{bigger_model_forward.1} parent=5 // pred_check
      _
    $region46: #{bigger_model_forward.1} parent=5 // pred_check_branch
      %254 = sbr.rel (%p251) target = $region48
    $region47: #{bigger_model_forward.1} parent=5 // pred_region
      %s255 = ssub.s32 %s13, 1
      %p256 = pneg %p46
      %p257 = pneg %p43
      %p258 = pneg %p67
      %p259 = pneg %p64
      %p260 = pneg %p88
      %p261 = pneg %p85
      %p262 = pneg %p109
      %p263 = pneg %p106
      %p264 = pneg %p130
      %p265 = pneg %p127
      %p266 = pneg %p151
      %p267 = pneg %p148
      %p268 = scmp.lt.s32.totalorder %s23, 0
      %s269 = scalar_select %p268, %s23, 0
      %s270 = smul.addr %s269, 4
      %s271 = scalar_lea.vmem %s6, %s270
      %p272 = pneg %p177
      %p273 = pneg %p174
      %p274 = pneg %p205
      %p275 = pneg %p202
      %s276 = smul.u32 %s23, %s22
      %p277 = scmp.lt.s32.totalorder %s276, 0
      %s278 = scalar_select %p277, %s276, 0
      %s279 = smul.addr %s278, 8
      %s280 = scalar_lea.vmem %s7, %s279
      %p281 = scmp.lt.s32.totalorder %s23, 0
      %s282 = scalar_select %p281, %s23, 0
      %s283 = smul.addr %s282, 4
      %s284 = scalar_lea.vmem %s6, %s283
      %s285 = smul.u32 %s23, %s22
      %p286 = scmp.lt.s32.totalorder %s285, 0
      %s287 = scalar_select %p286, %s285, 0
      %s288 = smul.addr %s287, 8
      %s289 = scalar_lea.vmem %s7, %s288
      %s290 = smul.u32 %s23, %s22
      %v291 = vld [vmem:[%s284] sm:$0x1]
      %v292 = vld [vmem:[%s284 + $0x1] sm:$0x1]
      %v293 = vld [vmem:[%s284 + $0x2] sm:$0x1]
      %v294 = vld [vmem:[%s1] sm:$0xff]
      %v295 = vld [vmem:[%s0] sm:$0xff]
      %v296 = vlaneseq
      %v297 = vshrl.u32 %v296, 7
      %v298 = vsub.s32 0, %v297
      %v299 = vrot.slane %v291, %v298
      %301 = vset.pattern.permute.xlu0 0
      %302 = vperm.xlu0 %301, %v295
      %v303 = vpop.permute.xlu0 %302
      %v305 = vmul.f32 %v299, %v303
      %307 = vset.pattern.permute.xlu0 0
      %308 = vperm.xlu0 %307, %v294
      %v309 = vpop.permute.xlu0 %308
      %v311 = vadd.f32 %v309, %v305
      %v312 = vlaneseq
      %v313 = vshrl.u32 %v312, 7
      %v314 = vsub.s32 0, %v313
      %v315 = vrot.slane %v292, %v314
      %316 = vset.pattern.permute.xlu0 1
      %317 = vperm.xlu0 %316, %v295
      %v318 = vpop.permute.xlu0 %317
      %v320 = vmul.f32 %v315, %v318
      %v321 = vadd.f32 %v311, %v320
      %v322 = vlaneseq
      %v323 = vshrl.u32 %v322, 7
      %v324 = vsub.s32 0, %v323
      %v325 = vrot.slane %v293, %v324
      %326 = vset.pattern.permute.xlu0 2
      %327 = vperm.xlu0 %326, %v295
      %v328 = vpop.permute.xlu0 %327
      %v330 = vmul.f32 %v325, %v328
      %v331 = vadd.f32 %v321, %v330
      %p332 = scmp.eq.s32.totalorder %s22, 0
      %p333 = scmp.eq.s32.totalorder %s23, 0
      %p334 = pnand %p332, %p333
      %p335 = pneg %p334
      // Predicated region
      $region49: #{bigger_model_forward.1} parent=47 // pred_check
        _
      $region50: #{bigger_model_forward.1} parent=47 // pred_check_branch
        %337 = sbr.rel (%p334) target = $region52
      $region51: #{bigger_model_forward.1} parent=47 // pred_region
        %vm338 = vcmask 7168
        %339 = vst.msk [vmem:[#allocation2] sm:$0xff] %vm338, 0.0
        %340 = vst.msk [vmem:[#allocation3] sm:$0xff] %vm338, 0.0
      $region52: #{bigger_model_forward.1} parent=47 // pred_fallthru
        _
      // Predicated region
      $region53: #{bigger_model_forward.1} parent=47 // pred_check
        %p341 = pneg %p332
      $region54: #{bigger_model_forward.1} parent=47 // pred_check_branch
        %343 = sbr.rel (%p341) target = $region56
      $region55: #{bigger_model_forward.1} parent=47 // pred_region
        %p344 = scmp.lt.s32.totalorder %s23, 0
        // Predicated region
        $region57: #{bigger_model_forward.1} parent=55 // pred_check
          %p345 = pneg %p344
        $region58: #{bigger_model_forward.1} parent=55 // pred_check_branch
          %347 = sbr.rel (%p345) target = $region60
        $region59: #{bigger_model_forward.1} parent=55 // pred_region
          %v348 = vld [vmem:[#allocation2] sm:$0xff]
          %349 = vadd.xlane.f32.xlu0 %v331
          %v350 = vpop.xlane.xlu0 %349
          %v351 = vadd.f32 %v348, %v350
          %vm352 = vcmask 7168
          %353 = vst.msk [vmem:[#allocation2] sm:$0xff] %vm352, %v351
          %v354 = vld [vmem:[#allocation3] sm:$0xff]
          %v355 = vmul.f32 %v331, %v331
          %356 = vadd.xlane.f32.xlu0 %v355
          %v357 = vpop.xlane.xlu0 %356
          %v358 = vadd.f32 %v354, %v357
          %359 = vst.msk [vmem:[#allocation3] sm:$0xff] %vm352, %v358
        $region60: #{bigger_model_forward.1} parent=55 // pred_fallthru
          _
        // Predicated region
        $region61: #{bigger_model_forward.1} parent=55 // pred_check
          %p360 = pneg %p333
        $region62: #{bigger_model_forward.1} parent=55 // pred_check_branch
          %362 = sbr.rel (%p360) target = $region64
        $region63: #{bigger_model_forward.1} parent=55 // pred_region
          %v363 = vlaneseq
          %v364 = vand.u32 %v363, 127
          %vm365 = vcmp.lt.s32.totalorder %v364, 8
          %v366 = vsel %vm365, 1, 0
          %vm367 = vcmp.eq.s32.totalorder %v366, 1
          %v368 = vsel %vm367, %v331, 0.0
          %v369 = vld [vmem:[#allocation2] sm:$0xff]
          %370 = vadd.xlane.f32.xlu0 %v368
          %v371 = vpop.xlane.xlu0 %370
          %v372 = vadd.f32 %v369, %v371
          %vm373 = vcmask 7168
          %374 = vst.msk [vmem:[#allocation2] sm:$0xff] %vm373, %v372
          %v375 = vld [vmem:[#allocation3] sm:$0xff]
          %v376 = vmul.f32 %v368, %v368
          %377 = vadd.xlane.f32.xlu0 %v376
          %v378 = vpop.xlane.xlu0 %377
          %v379 = vadd.f32 %v375, %v378
          %380 = vst.msk [vmem:[#allocation3] sm:$0xff] %vm373, %v379
          %v381 = vld [vmem:[#allocation2] sm:$0xff]
          %v382 = vmul.f32 %v381, 0.125
          %v383 = vld [vmem:[#allocation3] sm:$0xff]
          %v384 = vmul.f32 %v383, 0.125
          %v385 = vmul.f32 %v382, %v382
          %v386 = vsub.f32 %v384, %v385
          %v387 = vadd.f32 %v386, 1e-05
          %v388 = vrsqrt.pop %v387
          %v389 = vld [vmem:[%s4] sm:$0xff]
          %v390 = vmul.f32 %v389, %v388
          %391 = vst.msk [vmem:[#allocation4] sm:$0xff] %vm373, %v390
          %v392 = vld [vmem:[%s5] sm:$0xff]
          %v393 = vmul.f32 %v382, %v390
          %v394 = vsub.f32 %v392, %v393
          %395 = vst.msk [vmem:[#allocation5] sm:$0xff] %vm373, %v394
        $region64: #{bigger_model_forward.1} parent=55 // pred_fallthru
          _
      $region56: #{bigger_model_forward.1} parent=47 // pred_fallthru
        _
      %p396 = scmp.eq.s32.totalorder %s22, 1
      // Predicated region
      $region65: #{bigger_model_forward.1} parent=47 // pred_check
        %p397 = pneg %p396
      $region66: #{bigger_model_forward.1} parent=47 // pred_check_branch
        %399 = sbr.rel (%p397) target = $region68
      $region67: #{bigger_model_forward.1} parent=47 // pred_region
        %v400 = vld [vmem:[#allocation4] sm:$0xff]
        %402 = vset.pattern.permute.xlu0 0
        %403 = vperm.xlu0 %402, %v400
        %v404 = vpop.permute.xlu0 %403
        %v406 = vmul.f32 %v404, %v331
        %v407 = vld [vmem:[#allocation5] sm:$0xff]
        %409 = vset.pattern.permute.xlu0 0
        %410 = vperm.xlu0 %409, %v407
        %v411 = vpop.permute.xlu0 %410
        %v413 = vadd.f32 %v406, %v411
        %v414 = vld [vmem:[%s2] sm:$0xff]
        %v415 = vld [vmem:[%s3] sm:$0xff]
        %417 = vset.pattern.permute.xlu0 0
        %418 = vperm.xlu0 %417, %v415
        %v419 = vpop.permute.xlu0 %418
        %vm421 = vcmask 64512
        %v423 = vsel %vm421, %v414, 0
        %425 = vmatprep.subr.mxu0 0.0
        %426 = vmatpush1.msra.mxu0 %v413
        %427 = vmatprep.subr.mxu0 0.0
        %428 = vmatpush1.msra.mxu0 0.0
        %429 = vmatprep.subr.mxu0 0.0
        %430 = vmatpush1.msra.mxu0 0.0
        %431 = vmatprep.subr.mxu0 0.0
        %432 = vmatpush1.msra.mxu0 0.0
        %433 = vmatprep.subr.mxu0 0.0
        %434 = vmatpush1.msra.mxu0 0.0
        %435 = vmatprep.subr.mxu0 0.0
        %436 = vmatpush1.msra.mxu0 0.0
        %437 = vmatprep.subr.mxu0 0.0
        %438 = vmatpush1.msra.mxu0 0.0
        %439 = vmatprep.subr.mxu0 0.0
        %440 = vmatpush1.msra.mxu0 0.0
        %441 = vmatprep.subr.mxu0 0.0
        %442 = vmatpush1.msra.mxu0 0.0
        %443 = vmatprep.subr.mxu0 0.0
        %444 = vmatpush1.msra.mxu0 0.0
        %445 = vmatprep.subr.mxu0 0.0
        %446 = vmatpush1.msra.mxu0 0.0
        %447 = vmatprep.subr.mxu0 0.0
        %448 = vmatpush1.msra.mxu0 0.0
        %449 = vmatprep.subr.mxu0 0.0
        %450 = vmatpush1.msra.mxu0 0.0
        %451 = vmatprep.subr.mxu0 0.0
        %452 = vmatpush1.msra.mxu0 0.0
        %453 = vmatprep.subr.mxu0 0.0
        %454 = vmatpush1.msra.mxu0 0.0
        %455 = vmatprep.subr.mxu0 0.0
        %456 = vmatpush1.msra.mxu0 0.0
        %457 = vmatprep.subr.mxu0 0.0
        %458 = vmatpush1.msra.mxu0 0.0
        %459 = vmatprep.subr.mxu0 0.0
        %460 = vmatpush1.msra.mxu0 0.0
        %461 = vmatprep.subr.mxu0 0.0
        %462 = vmatpush1.msra.mxu0 0.0
        %463 = vmatprep.subr.mxu0 0.0
        %464 = vmatpush1.msra.mxu0 0.0
        %465 = vmatprep.subr.mxu0 0.0
        %466 = vmatpush1.msra.mxu0 0.0
        %467 = vmatprep.subr.mxu0 0.0
        %468 = vmatpush1.msra.mxu0 0.0
        %469 = vmatprep.subr.mxu0 0.0
        %470 = vmatpush1.msra.mxu0 0.0
        %471 = vmatprep.subr.mxu0 0.0
        %472 = vmatpush1.msra.mxu0 0.0
        %473 = vmatprep.subr.mxu0 0.0
        %474 = vmatpush1.msra.mxu0 0.0
        %475 = vmatprep.subr.mxu0 0.0
        %476 = vmatpush1.msra.mxu0 0.0
        %477 = vmatprep.subr.mxu0 0.0
        %478 = vmatpush1.msra.mxu0 0.0
        %479 = vmatprep.subr.mxu0 0.0
        %480 = vmatpush1.msra.mxu0 0.0
        %481 = vmatprep.subr.mxu0 0.0
        %482 = vmatpush1.msra.mxu0 0.0
        %483 = vmatprep.subr.mxu0 0.0
        %484 = vmatpush1.msra.mxu0 0.0
        %485 = vmatprep.subr.mxu0 0.0
        %486 = vmatpush1.msra.mxu0 0.0
        %487 = vmatprep.subr.mxu0 0.0
        %488 = vmatpush1.msra.mxu0 0.0
        %489 = vmatprep.mubr.f32.mxu0 0.0
        %490 = vmatmul.mubr.f32.gmra.mrb[0].mxu0 %v423
        %v491 = vpop.f32.mrb[0].mxu0
        %v492 = vadd.f32 %v419, %v491
        %v493 = vpop.f32.mrb[0].mxu0
        %494 = vdwg.mxu0
        %495 = vst [vmem:[%s289] sm:$0x1f] %v492
      $region68: #{bigger_model_forward.1} parent=47 // pred_fallthru
        _
      %s496 = smul.u32 %s23, %s22
      %p497 = scmp.lt.s32.totalorder %s496, 0
      %s498 = scalar_select %p497, %s496, 0
      %s499 = smul.addr %s498, 8
      %s500 = scalar_lea.vmem %s7, %s499
      // Predicated region
      $region69: #{bigger_model_forward.1} parent=47 // pred_check
        %p501 = pneg %p202
      $region70: #{bigger_model_forward.1} parent=47 // pred_check_branch
        %503 = sbr.rel (%p501) target = $region72
      $region71: #{bigger_model_forward.1} parent=47 // pred_region
        %s504 = smul.u32 %s23, %s22
      $region72: #{bigger_model_forward.1} parent=47 // pred_fallthru
        _
    $region48: #{bigger_model_forward.1} parent=5 // pred_fallthru
      _
    %p505 = scmp.le.s32.totalorder 2, %s13
    // Predicated region
    $region73: #{bigger_model_forward.1} parent=5 // pred_check
      %p506 = pneg %p505
    $region74: #{bigger_model_forward.1} parent=5 // pred_check_branch
      %508 = sbr.rel (%p506) target = $region76
    $region75: #{bigger_model_forward.1} parent=5 // pred_region
      %s509 = ssub.s32 %s13, 2
      // Predicated region
      $region77: #{bigger_model_forward.1} parent=75 // pred_check
        %p510 = pneg %p208
      $region78: #{bigger_model_forward.1} parent=75 // pred_check_branch
        %512 = sbr.rel (%p510) target = $region80
      $region79: #{bigger_model_forward.1} parent=75 // pred_region
        %s513 = smul.u32 %s25, %s24
        %p514 = scmp.lt.s32.totalorder %s513, 0
        %s515 = scalar_select %p514, %s513, 0
        %s516 = smul.addr %s515, 8
        %s517 = scalar_lea.vmem %s7, %s516
      $region80: #{bigger_model_forward.1} parent=75 // pred_fallthru
        _
    $region76: #{bigger_model_forward.1} parent=5 // pred_fallthru
      _
  $region6: #{bigger_model_forward.1} parent=0 // loop_footer
    %s17 = sadd.s32 1, %s13
  $region7: #{bigger_model_forward.1} parent=0 // loop_footer_branch
    %12 = sbr.rel target = $region3
  $region8: #{bigger_model_forward.1} parent=0 // loop_exit
    _

</llo_original>
